<compile_context>
chip_gen: v6e
topology: v6e:2x2x1
jax: 0.10.0
libtpu: 0.0.40
codegen_flags: <defaults>
</compile_context>

<pallas_src>
import jax
import jax.numpy as jnp
from jax import lax
from jax.experimental import pallas as pl
from jax.experimental.pallas import tpu as pltpu

EPS = 1e-5
NEG_SLOPE = 0.2
KH = KW = 4


def _unet_down_kernel(x_ref, w_ref, o_ref):
    # x_ref: (1, P, K)  bf16 im2col patches, K = 16*C_in (taps folded into K)
    # w_ref: (K, CT)    bf16 weights, CT = cout_tile (lane-dense, zero-padded)
    # o_ref: (1, P, CT) output tile
    # Conv2d(4,4,stride=2,pad=1) == one wide-K MXU matmul, f32 accumulation.
    acc = jnp.dot(x_ref[0], w_ref[...], preferred_element_type=jnp.float32)  # (P, CT)

    # InstanceNorm2d (no affine, biased variance, eps=1e-5): single-pass stats.
    p = acc.shape[0]
    inv_p = 1.0 / p
    mean = jnp.sum(acc, axis=0, keepdims=True) * inv_p                      # (1, CT)
    ex2 = jnp.sum(acc * acc, axis=0, keepdims=True) * inv_p                 # (1, CT)
    var = jnp.maximum(ex2 - mean * mean, 0.0)
    scale = lax.rsqrt(var + EPS)

    # Fused normalize + LeakyReLU(0.2) + cast: single pass over the accumulator.
    # Zero-padded output channels give acc==0 -> y==0 exactly (sliced off later).
    y = (acc - mean) * scale
    o_ref[0] = jnp.where(y > 0, y, NEG_SLOPE * y).astype(o_ref.dtype)


def _auto_cout_tile(c_out, p_dim, k_total, out_itemsize):
    """256-wide tiles for big-C_out layers when the per-step footprint is
    v7x-safe (<=~40 MiB); otherwise 128 (v5e MXU width / large-P layers)."""
    if c_out >= 256:
        need_256 = (2 * p_dim * k_total * 2          # LHS, double-buffered bf16
                    + 2 * k_total * 256 * 2          # weights, double-buffered bf16
                    + 2 * p_dim * 256 * out_itemsize # out, double-buffered
                    + p_dim * 256 * 4)               # f32 accumulator
        if need_256 <= (40 << 20):
            return 256
    return 128


def _pick_vmem_limit(needed_bytes):
    cap = 64 << 20  # conservative fallback (v7x per-TC physical VMEM)
    try:
        cap = int(pltpu.get_tpu_info().vmem_capacity_bytes)
    except Exception:
        pass
    # ~3/4 of physical: 48 MiB on v7x, 96 MiB on v5e/v6e.
    return int(min(max(needed_bytes * 5 // 4, 32 << 20), cap * 3 // 4))


def unet_down(x, weight, *, cout_tile=None, out_dtype=jnp.float32,
              out_layout="NCHW"):
    """x: (N, C_in, H, W) f32, weight: (C_out, C_in, 4, 4) f32.

    Returns (N, C_out, H/2, W/2) NCHW (PyTorch layout) by default.  When
    chaining into the next UNetDown, pass out_dtype=jnp.bfloat16 and
    out_layout="NHWC" to halve HBM writeback and skip the layout transpose.
    """
    n, c_in, h, w = x.shape
    c_out = weight.shape[0]
    assert h % 2 == 0 and w % 2 == 0, "UNetDown expects even H and W"
    assert weight.shape == (c_out, c_in, KH, KW), weight.shape
    ho, wo = h // 2, w // 2
    p_dim = ho * wo
    k_total = KH * KW * c_in
    out_itemsize = jnp.dtype(out_dtype).itemsize

    if cout_tile is None:
        cout_tile = _auto_cout_tile(c_out, p_dim, k_total, out_itemsize)
    cp_total = pl.cdiv(c_out, cout_tile) * cout_tile
    n_ct = cp_total // cout_tile

    # ---- Wrapper-side im2col (taps folded into K), all in bf16. ----
    # patches[b, i*Wo+j, (ki*4+kj)*C_in + c] = x_pad[b, c, 2i+ki, 2j+kj]
    xb = jnp.pad(x.astype(jnp.bfloat16), ((0, 0), (0, 0), (1, 1), (1, 1)))
    taps = [xb[:, :, ki:ki + 2 * ho:2, kj:kj + 2 * wo:2]        # (N, C_in, Ho, Wo)
            for ki in range(KH) for kj in range(KW)]
    patches = jnp.stack(taps, axis=-1)                           # (N, C_in, Ho, Wo, 16)
    patches = jnp.transpose(patches, (0, 2, 3, 4, 1)).reshape(n, p_dim, k_total)

    # Weights (C_out, C_in, 4, 4) -> (16*C_in, Cp), same K ordering; zero-pad
    # along the output-channel (lane) dim; bf16.
    w_t = jnp.transpose(weight, (2, 3, 1, 0)).reshape(k_total, c_out)
    w_t = jnp.pad(w_t, ((0, 0), (0, cp_total - c_out))).astype(jnp.bfloat16)

    # ---- Cost / VMEM bookkeeping. ----
    flops = 2 * n * p_dim * k_total * cp_total
    bytes_accessed = int(n_ct * patches.size * 2 + w_t.size * 2
                         + n * p_dim * cp_total * out_itemsize)
    per_step_vmem = (2 * p_dim * k_total * 2
                     + 2 * k_total * cout_tile * 2
                     + 2 * p_dim * cout_tile * out_itemsize
                     + p_dim * cout_tile * 4)
    vmem_limit = _pick_vmem_limit(per_step_vmem)

    # TODO(synk): for the first pix2pix layer at N=1 (single grid step, large P)
    # add a P-tiling grid axis with streaming sum/sumsq InstanceNorm stats, and
    # fold the batch dim into the matmul M for the P<128 bottleneck layers.
    out = pl.pallas_call(
        _unet_down_kernel,
        out_shape=jax.ShapeDtypeStruct((n, p_dim, cp_total), out_dtype),
        grid_spec=pltpu.PrefetchScalarGridSpec(
            num_scalar_prefetch=0,
            grid=(n_ct, n),   # channel tiles outermost -> weight tile resident across batch
            in_specs=[
                pl.BlockSpec((1, p_dim, k_total), lambda ct, b: (b, 0, 0)),
                pl.BlockSpec((k_total, cout_tile), lambda ct, b: (0, ct)),
            ],
            out_specs=pl.BlockSpec((1, p_dim, cout_tile),
                                   lambda ct, b: (b, 0, ct)),
        ),
        compiler_params=pltpu.CompilerParams(
            dimension_semantics=("parallel", "parallel"),
            vmem_limit_bytes=vmem_limit),
        cost_estimate=pl.CostEstimate(
            flops=flops,
            transcendentals=n * cp_total,
            bytes_accessed=bytes_accessed),
    )(patches, w_t)

    out = out[:, :, :c_out].reshape(n, ho, wo, c_out)            # NHWC (lane-dense)
    if out_layout == "NHWC":
        return out
    return jnp.transpose(out, (0, 3, 1, 2))                      # NCHW, matches PyTorch


def _reference(x, weight):
    """Pure-JAX f32 reference of Conv2d -> InstanceNorm2d -> LeakyReLU(0.2)."""
    y = lax.conv_general_dilated(
        x, weight, window_strides=(2, 2), padding=((1, 1), (1, 1)),
        dimension_numbers=("NCHW", "OIHW", "NCHW"))
    mean = jnp.mean(y, axis=(2, 3), keepdims=True)
    var = jnp.var(y, axis=(2, 3), keepdims=True)                 # biased, like InstanceNorm2d
    yn = (y - mean) * lax.rsqrt(var + EPS)
    return jnp.where(yn > 0, yn, NEG_SLOPE * yn)


if __name__ == "__main__":
    key = jax.random.PRNGKey(0)
    kx, kw = jax.random.split(key)

    N, C_IN, H, W = 2, 4, 16, 16
    C_OUT = 8

    x = jax.random.normal(kx, (N, C_IN, H, W), dtype=jnp.float32)
    # Deterministic synthetic Conv2d weight (bias=False in the module).
    weight = jax.random.normal(kw, (C_OUT, C_IN, 4, 4), dtype=jnp.float32) * 0.05

    y = unet_down(x, weight)
    y = jax.block_until_ready(y)

    assert y.shape == (N, C_OUT, H // 2, W // 2), y.shape
    assert bool(jnp.all(jnp.isfinite(y)))

    y_ref = _reference(x, weight)
    max_diff = float(jnp.max(jnp.abs(y - y_ref)))
    assert bool(jnp.allclose(y, y_ref, atol=5e-2, rtol=5e-2)), max_diff

    print("KERNEL_OK")
</pallas_src>

<mosaic_0001>
module attributes {stable_mosaic.version = 11 : i64} {
  func.func @_unet_down_kernel(%arg0: i32, %arg1: i32, %arg2: memref<1x64x64xbf16, #tpu.memory_space<vmem>>, %arg3: memref<64x128xbf16, #tpu.memory_space<vmem>>, %arg4: memref<1x64x128xf32, #tpu.memory_space<vmem>>) attributes {dimension_semantics = [#tpu.dimension_semantics<parallel>, #tpu.dimension_semantics<parallel>], iteration_bounds = array<i64: 1, 2>, scalar_prefetch = 0 : i64, scratch_operands = 0 : i64, tpu.core_type = #tpu.core_type<tc>, window_params = [{transform_indices = @transform_0, window_bounds = array<i64: 1, 64, 64>}, {transform_indices = @transform_1, window_bounds = array<i64: 64, 128>}, {transform_indices = @transform_2, window_bounds = array<i64: 1, 64, 128>}]} {
    %c0 = arith.constant 0 : index
    %c0_0 = arith.constant 0 : index
    %c0_1 = arith.constant 0 : index
    %0 = vector.load %arg2[%c0, %c0_0, %c0_1] : memref<1x64x64xbf16, #tpu.memory_space<vmem>>, vector<1x64x64xbf16>
    %1 = vector.shape_cast %0 : vector<1x64x64xbf16> to vector<64x64xbf16>
    %c0_2 = arith.constant 0 : index
    %c0_3 = arith.constant 0 : index
    %2 = vector.load %arg3[%c0_2, %c0_3] : memref<64x128xbf16, #tpu.memory_space<vmem>>, vector<64x128xbf16>
    %cst = arith.constant dense<0.000000e+00> : vector<64x128xf32>
    %3 = tpu.matmul %1, %2, %cst {dimension_numbers = #tpu.dot_dimension_numbers<[1], [0], [0], [1], [0, 0, 1, 1], [], []>} : vector<64x64xbf16>, vector<64x128xbf16>, vector<64x128xf32> -> vector<64x128xf32>
    %cst_4 = arith.constant dense<0.000000e+00> : vector<128xf32>
    %4 = vector.multi_reduction <add>, %3, %cst_4 [0] : vector<64x128xf32> to vector<128xf32>
    %5 = vector.shape_cast %4 : vector<128xf32> to vector<1x128xf32>
    %cst_5 = arith.constant 1.562500e-02 : f32
    %6 = vector.broadcast %cst_5 : f32 to vector<1x128xf32>
    %7 = arith.mulf %5, %6 : vector<1x128xf32>
    %8 = arith.mulf %3, %3 : vector<64x128xf32>
    %cst_6 = arith.constant dense<0.000000e+00> : vector<128xf32>
    %9 = vector.multi_reduction <add>, %8, %cst_6 [0] : vector<64x128xf32> to vector<128xf32>
    %10 = vector.shape_cast %9 : vector<128xf32> to vector<1x128xf32>
    %cst_7 = arith.constant 1.562500e-02 : f32
    %11 = vector.broadcast %cst_7 : f32 to vector<1x128xf32>
    %12 = arith.mulf %10, %11 : vector<1x128xf32>
    %13 = arith.mulf %7, %7 : vector<1x128xf32>
    %14 = arith.subf %12, %13 : vector<1x128xf32>
    %cst_8 = arith.constant 0.000000e+00 : f32
    %15 = vector.broadcast %cst_8 : f32 to vector<1x128xf32>
    %16 = arith.maximumf %14, %15 : vector<1x128xf32>
    %cst_9 = arith.constant 9.99999974E-6 : f32
    %17 = vector.broadcast %cst_9 : f32 to vector<1x128xf32>
    %18 = arith.addf %16, %17 : vector<1x128xf32>
    %19 = math.rsqrt %18 : vector<1x128xf32>
    %20 = vector.broadcast %7 : vector<1x128xf32> to vector<64x128xf32>
    %21 = arith.subf %3, %20 : vector<64x128xf32>
    %22 = vector.broadcast %19 : vector<1x128xf32> to vector<64x128xf32>
    %23 = arith.mulf %21, %22 : vector<64x128xf32>
    %cst_10 = arith.constant 0.000000e+00 : f32
    %24 = vector.broadcast %cst_10 : f32 to vector<64x128xf32>
    %25 = arith.cmpf ogt, %23, %24 : vector<64x128xf32>
    %cst_11 = arith.constant 2.000000e-01 : f32
    %26 = vector.broadcast %cst_11 : f32 to vector<64x128xf32>
    %27 = arith.mulf %26, %23 : vector<64x128xf32>
    %28 = arith.select %25, %23, %27 : vector<64x128xi1>, vector<64x128xf32>
    %c0_12 = arith.constant 0 : index
    %c0_13 = arith.constant 0 : index
    %c0_14 = arith.constant 0 : index
    %29 = vector.load %arg4[%c0_12, %c0_13, %c0_14] : memref<1x64x128xf32, #tpu.memory_space<vmem>>, vector<1x64x128xf32>
    %30 = vector.shape_cast %29 : vector<1x64x128xf32> to vector<64x128xf32>
    %31 = vector.shape_cast %28 : vector<64x128xf32> to vector<1x64x128xf32>
    tpu.vector_store %arg4[%c0_12, %c0_13, %c0_14], %31 {strides = array<i32>} : memref<1x64x128xf32, #tpu.memory_space<vmem>>, vector<1x64x128xf32>,
    return
  }
  func.func @transform_0(%arg0: i32, %arg1: i32) -> (i32, i32, i32) {
    %c0_i32 = arith.constant 0 : i32
    %c0_i32_0 = arith.constant 0 : i32
    %c0_i32_1 = arith.constant 0 : i32
    return %arg1, %c0_i32, %c0_i32_0 : i32, i32, i32
  }
  func.func @transform_1(%arg0: i32, %arg1: i32) -> (i32, i32) {
    %c0_i32 = arith.constant 0 : i32
    %c0_i32_0 = arith.constant 0 : i32
    return %c0_i32, %arg0 : i32, i32
  }
  func.func @transform_2(%arg0: i32, %arg1: i32) -> (i32, i32, i32) {
    %c0_i32 = arith.constant 0 : i32
    %c0_i32_0 = arith.constant 0 : i32
    return %arg1, %c0_i32, %arg0 : i32, i32, i32
  }
}

</mosaic_0001>

<llo_original>
// kernel: tpu_custom_call.1
$region0: #{tpu_custom_call.1}
  #allocation0 [shape = 'u32[]', space=smem, size = 0x4, offset = 0x4, fixed_abs, tag = 'smem constant byte address 0x4 - core index']
  #allocation1 [shape = 'u32[144,128]{1,0:T(1,128)}', space=vmem, size = 0x12000, scoped, tag = 'internal scratch']
  %s0 = inlined_call_operand.hbm [shape: bf16[2,64,64], index: 0, kind: input, shape index: {}]
  %s1 = inlined_call_operand.hbm [shape: bf16[64,128], index: 1, kind: input, shape index: {}]
  %s2 = inlined_call_operand.hbm [shape: f32[2,64,128], index: 2, kind: output, shape index: {}]
  %s3 = sld [smem:[#allocation0]]
  $region49: #{tpu_custom_call.1} parent=0
    _
  %s5 = ssub.s32 1, %s3
  %s6 = scalar_select 0, %s5, %s3
  $region1: #{tpu_custom_call.1} parent=0
    #allocation2 [shape = 'u8[32768]{0}', space=vmem, size = 0x8000, scoped, tag = 'input window, operand 0']
    #allocation3 [shape = 's32[2]{0}', space=sflag, size = 0x8, scoped, tag = 'scoped memory for tpu_custom_call.1']
    #allocation4 [shape = 's32[2]{0}', space=sflag, size = 0x8, scoped, tag = 'scoped memory for tpu_custom_call.1']
    #allocation5 [shape = 'u8[16384]{0}', space=vmem, size = 0x4000, scoped, tag = 'input window, operand 1, single buffered']
    #allocation6 [shape = 's32[1]{0}', space=sflag, size = 0x4, scoped, tag = 'scoped memory for tpu_custom_call.1']
    #allocation7 [shape = 'u8[65536]{0}', space=vmem, size = 0x10000, scoped, tag = 'output window, operand 0']
    %7 = vsyncpa [#allocation3], 0
    %s8 = scalar_lea.sflag [#allocation3], 1
    %9 = vsyncpa %s8, 0
    %10 = vsyncpa [#allocation6], 0
    %11 = vsyncpa [#allocation4], 0
    %s12 = scalar_lea.sflag [#allocation4], 1
    %13 = vsyncpa %s12, 0
    loop: start=0, step=1, limit=4
    $region2: #{tpu_custom_call.1} parent=1 // loop_pre_header
      _
    $region3: #{tpu_custom_call.1} parent=1 // loop_header
      %s15 = sphi 0, %s19
      %p16 = scmp.ge.s32.totalorder %s15, 4
      %s22 = sphi 0, %s34
      %s23 = sphi 0, %s30
      %s24 = sphi 0, %s22
      %s25 = sphi 0, %s23
      %s26 = sphi 0, %s24
      %s27 = sphi 0, %s25
      %s37 = sphi 0, %s39
      %s40 = sphi 0, %s37
      %s41 = sphi 0, %s40
      %s57 = sphi 0, %s41
      %s63 = sphi 0, %s65
      %s66 = sphi 0, %s63
      %s67 = sphi 0, %s66
      %s83 = sphi 0, %s67
      %s91 = sphi 0, %s93
      %s94 = sphi 0, %s91
      %s95 = sphi 0, %s94
      %s111 = sphi 0, %s95
    $region4: #{tpu_custom_call.1} parent=1 // loop_header_branch
      %18 = sbr.rel (%p16) target = $region8
    $region5: #{tpu_custom_call.1} parent=1 // loop_body
      %s20 = ssub.s32 %s15, 1
      %s21 = ssub.s32 %s15, 2
      %s28 = sadd.s32 1, %s23
      %p29 = scmp.ge.s32.totalorder %s28, 2
      %s30 = scalar_select %p29, 0, %s28
      %s31 = sadd.s32 1, %s22
      %s32 = scalar_select %p29, %s31, %s22
      %p33 = scmp.ge.s32.totalorder %s32, 1
      %s34 = scalar_select %p33, 0, %s32
      %s35 = ssub.s32 %s23, %s30
      %p36 = scmp.eq.s32.totalorder %s35, 0
      %s38 = sadd.s32 %s37, 1
      %s39 = scalar_select %p36, %s37, %s38
      %p42 = pneg %p36
      %p43 = scmp.eq.s32.totalorder %s15, 1
      %p44 = por %p42, %p43
      %p45 = scmp.ne.s32.totalorder %s37, %s40
      %p46 = scmp.eq.s32.totalorder %s15, 0
      %p47 = por %p45, %p46
      %p48 = scmp.ne.s32.totalorder %s37, %s40
      %p49 = scmp.eq.s32.totalorder %s20, 1
      %p50 = por %p48, %p49
      %p51 = scmp.ne.s32.totalorder %s40, %s41
      %p52 = scmp.eq.s32.totalorder %s20, 0
      %p53 = por %p51, %p52
      %p54 = scmp.ne.s32.totalorder %s40, %s41
      %p55 = scmp.eq.s32.totalorder %s21, 1
      %p56 = por %p54, %p55
      %p58 = scmp.ne.s32.totalorder %s41, %s57
      %p59 = scmp.eq.s32.totalorder %s21, 0
      %p60 = por %p58, %p59
      %s61 = ssub.s32 %s22, %s34
      %p62 = scmp.eq.s32.totalorder %s61, 0
      %s64 = sadd.s32 %s63, 1
      %s65 = scalar_select %p62, %s63, %s64
      %p68 = pneg %p62
      %p69 = scmp.eq.s32.totalorder %s15, 1
      %p70 = por %p68, %p69
      %p71 = scmp.ne.s32.totalorder %s63, %s66
      %p72 = scmp.eq.s32.totalorder %s15, 0
      %p73 = por %p71, %p72
      %p74 = scmp.ne.s32.totalorder %s63, %s66
      %p75 = scmp.eq.s32.totalorder %s20, 1
      %p76 = por %p74, %p75
      %p77 = scmp.ne.s32.totalorder %s66, %s67
      %p78 = scmp.eq.s32.totalorder %s20, 0
      %p79 = por %p77, %p78
      %p80 = scmp.ne.s32.totalorder %s66, %s67
      %p81 = scmp.eq.s32.totalorder %s21, 1
      %p82 = por %p80, %p81
      %p84 = scmp.ne.s32.totalorder %s67, %s83
      %p85 = scmp.eq.s32.totalorder %s21, 0
      %p86 = por %p84, %p85
      %s87 = ssub.s32 %s23, %s30
      %s88 = ssub.s32 %s22, %s34
      %s89 = sor.u32 %s87, %s88
      %p90 = scmp.eq.s32.totalorder %s89, 0
      %s92 = sadd.s32 %s91, 1
      %s93 = scalar_select %p90, %s91, %s92
      %p96 = pneg %p90
      %p97 = scmp.eq.s32.totalorder %s15, 1
      %p98 = por %p96, %p97
      %p99 = scmp.ne.s32.totalorder %s91, %s94
      %p100 = scmp.eq.s32.totalorder %s15, 0
      %p101 = por %p99, %p100
      %p102 = scmp.ne.s32.totalorder %s91, %s94
      %p103 = scmp.eq.s32.totalorder %s20, 1
      %p104 = por %p102, %p103
      %p105 = scmp.ne.s32.totalorder %s94, %s95
      %p106 = scmp.eq.s32.totalorder %s20, 0
      %p107 = por %p105, %p106
      %p108 = scmp.ne.s32.totalorder %s94, %s95
      %p109 = scmp.eq.s32.totalorder %s21, 1
      %p110 = por %p108, %p109
      %p112 = scmp.ne.s32.totalorder %s95, %s111
      %p113 = scmp.eq.s32.totalorder %s21, 0
      %p114 = por %p112, %p113
      %p115 = scmp.le.s32.totalorder 1, %s15
      %p116 = scmp.lt.s32.totalorder %s15, 3
      %p117 = pnand %p115, %p116
      %p118 = pneg %p117
      // Predicated region
      $region9: #{tpu_custom_call.1} parent=5 // pred_check
        _
      $region10: #{tpu_custom_call.1} parent=5 // pred_check_branch
        %120 = sbr.rel (%p117) target = $region12
      $region11: #{tpu_custom_call.1} parent=5 // pred_region
        %s121 = ssub.s32 %s15, 1
        // Predicated region
        $region13: #{tpu_custom_call.1} parent=11 // pred_check
          %p122 = pneg %p79
        $region14: #{tpu_custom_call.1} parent=11 // pred_check_branch
          %124 = sbr.rel (%p122) target = $region16
        $region15: #{tpu_custom_call.1} parent=11 // pred_region
          %s126 = ssub.s32 512, 512
          %127 = vsyncadd [#allocation6], %s126
          %s128 = smul.addr %s24, 64
          %s129 = scalar_lea.hbm %s1, %s128
          %s130 = sshll.u32 [#allocation5], 4
          %s131 = int_to_ptr.vmem [resolvable:$true] %s130
          %136 = dma.hbm_to_vmem [thread:$0]  %s129, 512, %s131, [#allocation6], 64, 64, 4
        $region16: #{tpu_custom_call.1} parent=11 // pred_fallthru
          _
      $region12: #{tpu_custom_call.1} parent=5 // pred_fallthru
        _
      %p137 = scmp.lt.s32.totalorder %s15, 2
      // Predicated region
      $region17: #{tpu_custom_call.1} parent=5 // pred_check
        %p138 = pneg %p137
      $region18: #{tpu_custom_call.1} parent=5 // pred_check_branch
        %140 = sbr.rel (%p138) target = $region20
      $region19: #{tpu_custom_call.1} parent=5 // pred_region
        // Predicated region
        $region21: #{tpu_custom_call.1} parent=19 // pred_check
          %p141 = pneg %p47
        $region22: #{tpu_custom_call.1} parent=19 // pred_check_branch
          %143 = sbr.rel (%p141) target = $region24
        $region23: #{tpu_custom_call.1} parent=19 // pred_region
          %s144 = sand.u32 %s37, 1
          %s145 = scalar_lea.sflag [#allocation3], %s144
          %s146 = sand.u32 %s37, 1
          %s147 = smul.addr %s146, 32
          %s148 = scalar_lea.vmem [#allocation2], %s147
          %s150 = ssub.s32 512, 512
          %151 = vsyncadd %s145, %s150
          %s152 = smul.addr %s23, 8
          %s153 = smul.addr %s152, 64
          %s154 = scalar_lea.hbm %s0, %s153
          %s155 = sshll.u32 %s148, 4
          %s156 = int_to_ptr.vmem [resolvable:$true] %s155
          %161 = dma.hbm_to_vmem [thread:$0]  %s154, 512, %s156, %s145, 64, 64, 4
        $region24: #{tpu_custom_call.1} parent=19 // pred_fallthru
          _
      $region20: #{tpu_custom_call.1} parent=5 // pred_fallthru
        _
      %p162 = scmp.le.s32.totalorder 1, %s15
      %p163 = scmp.lt.s32.totalorder %s15, 3
      %p164 = pnand %p162, %p163
      %p165 = pneg %p164
      // Predicated region
      $region25: #{tpu_custom_call.1} parent=5 // pred_check
        _
      $region26: #{tpu_custom_call.1} parent=5 // pred_check_branch
        %167 = sbr.rel (%p164) target = $region28
      $region27: #{tpu_custom_call.1} parent=5 // pred_region
        %s168 = ssub.s32 %s15, 1
        %s169 = sand.u32 %s40, 1
        %s170 = scalar_lea.sflag [#allocation3], %s169
        %s171 = sand.u32 %s40, 1
        %s172 = smul.addr %s171, 32
        %s173 = scalar_lea.vmem [#allocation2], %s172
        // Predicated region
        $region29: #{tpu_custom_call.1} parent=27 // pred_check
          %p174 = pneg %p53
        $region30: #{tpu_custom_call.1} parent=27 // pred_check_branch
          %176 = sbr.rel (%p174) target = $region32
        $region31: #{tpu_custom_call.1} parent=27 // pred_region
          %177 = dma.done %s170, 512
        $region32: #{tpu_custom_call.1} parent=27 // pred_fallthru
          _
        // Predicated region
        $region33: #{tpu_custom_call.1} parent=27 // pred_check
          %p178 = pneg %p79
        $region34: #{tpu_custom_call.1} parent=27 // pred_check_branch
          %180 = sbr.rel (%p178) target = $region36
        $region35: #{tpu_custom_call.1} parent=27 // pred_region
          %181 = dma.done [#allocation6], 512
        $region36: #{tpu_custom_call.1} parent=27 // pred_fallthru
          _
        %s182 = sand.u32 %s40, 1
        %s183 = scalar_lea.sflag [#allocation3], %s182
        %s184 = sand.u32 %s40, 1
        %s185 = smul.addr %s184, 32
        %s186 = scalar_lea.vmem [#allocation2], %s185
        %p187 = pneg %p53
        %p188 = pneg %p50
        %p189 = pneg %p79
        %p190 = pneg %p76
        %p191 = pneg %p107
        %p192 = pneg %p104
        %s193 = sand.u32 %s94, 1
        %s194 = scalar_lea.sflag [#allocation4], %s193
        %s195 = sand.u32 %s94, 1
        %s196 = smul.addr %s195, 64
        %s197 = scalar_lea.vmem [#allocation7], %s196
        %v199 = vld [vmem:[%s173] sm:$0xf]
        %v200 = vld [vmem:[%s173 + $0x4] sm:$0xf]
        %v201 = vld [vmem:[%s173 + $0x8] sm:$0xf]
        %v202 = vld [vmem:[%s173 + $0xc] sm:$0xf]
        %v203 = vld [vmem:[%s173 + $0x10] sm:$0xf]
        %v204 = vld [vmem:[%s173 + $0x14] sm:$0xf]
        %v205 = vld [vmem:[%s173 + $0x18] sm:$0xf]
        %v206 = vld [vmem:[%s173 + $0x1c] sm:$0xf]
        %v207 = vld [vmem:[#allocation5] sm:$0xf]
        %v208 = vld [vmem:[#allocation5 + $0x4] sm:$0xf]
        %v209 = vld [vmem:[#allocation5 + $0x8] sm:$0xf]
        %v210 = vld [vmem:[#allocation5 + $0xc] sm:$0xf]
        %v211 = vld [vmem:[#allocation5 + $0x10] sm:$0xf]
        %v212 = vld [vmem:[#allocation5 + $0x14] sm:$0xf]
        %v213 = vld [vmem:[#allocation5 + $0x18] sm:$0xf]
        %v214 = vld [vmem:[#allocation5 + $0x1c] sm:$0xf]
        %v223 = vunpack.c.l.b16 %v199
        %v224 = vunpack.c.l.b16 %v200
        %v225 = vunpack.c.l.b16 %v201
        %v226 = vunpack.c.l.b16 %v202
        %v227 = vunpack.c.l.b16 %v203
        %v228 = vunpack.c.l.b16 %v204
        %v229 = vunpack.c.l.b16 %v205
        %v230 = vunpack.c.l.b16 %v206
        %v231 = vpack.c.b16 %v224, %v223
        %v232 = vpack.c.b16 %v226, %v225
        %v233 = vpack.c.b16 %v228, %v227
        %v234 = vpack.c.b16 %v230, %v229
        %v243 = vunpack.c.l.b16 %v207
        %v244 = vunpack.c.l.b16 %v208
        %v245 = vunpack.c.l.b16 %v209
        %v246 = vunpack.c.l.b16 %v210
        %v247 = vunpack.c.l.b16 %v211
        %v248 = vunpack.c.l.b16 %v212
        %v249 = vunpack.c.l.b16 %v213
        %v250 = vunpack.c.l.b16 %v214
        %v251 = vpack.c.b16 %v244, %v243
        %v252 = vpack.c.b16 %v246, %v245
        %v253 = vpack.c.b16 %v248, %v247
        %v254 = vpack.c.b16 %v250, %v249
        %vm259 = vcmask 523264
        %v261 = vsel %vm259, %v231, 0
        %v264 = vsel %vm259, %v232, 0
        %v267 = vsel %vm259, %v233, 0
        %v270 = vsel %vm259, %v234, 0
        %272 = vmatprep.subr.bf16.mxu0 0
        %273 = vmatpush1.bf16.msra.mxu0 0
        %274 = vmatprep.subr.bf16.mxu0 0
        %275 = vmatpush1.bf16.msra.mxu0 0
        %276 = vmatprep.subr.bf16.mxu0 0
        %277 = vmatpush1.bf16.msra.mxu0 0
        %278 = vmatprep.subr.bf16.mxu0 0
        %279 = vmatpush1.bf16.msra.mxu0 0
        %280 = vmatprep.subr.bf16.mxu0 0
        %281 = vmatpush1.bf16.msra.mxu0 %v254
        %282 = vmatprep.subr.bf16.mxu0 0
        %283 = vmatpush1.bf16.msra.mxu0 %v253
        %284 = vmatprep.subr.bf16.mxu0 0
        %285 = vmatpush1.bf16.msra.mxu0 %v252
        %286 = vmatprep.subr.bf16.mxu0 0
        %287 = vmatpush1.bf16.msra.mxu0 %v251
        %288 = vmatprep.subr.bf16.mxu0 0
        %289 = vmatpush2.bf16.msra.mxu0 0
        %290 = vmatprep.subr.bf16.mxu0 0
        %291 = vmatpush2.bf16.msra.mxu0 0
        %292 = vmatprep.subr.bf16.mxu0 0
        %293 = vmatpush2.bf16.msra.mxu0 0
        %294 = vmatprep.subr.bf16.mxu0 0
        %295 = vmatpush2.bf16.msra.mxu0 0
        %296 = vmatprep.subr.bf16.mxu0 0
        %297 = vmatpush2.bf16.msra.mxu0 0
        %298 = vmatprep.subr.bf16.mxu0 0
        %299 = vmatpush2.bf16.msra.mxu0 0
        %300 = vmatprep.subr.bf16.mxu0 0
        %301 = vmatpush2.bf16.msra.mxu0 0
        %302 = vmatprep.subr.bf16.mxu0 0
        %303 = vmatpush2.bf16.msra.mxu0 0
        %304 = vmatprep.mubr.bf16.mxu0 0
        %305 = vmatmul.mubr.bf16.gmra.mxu0 %v261
        %v306 = vpop.f32.mrf.mxu0
        %v307 = vadd.f32 0.0, %v306
        %v308 = vpop.f32.mrf.mxu0
        %v309 = vpop.f32.mrf.mxu0
        %v310 = vadd.f32 0.0, %v309
        %v311 = vpop.f32.mrf.mxu0
        %312 = vmatprep.mubr.bf16.mxu0 0
        %313 = vmatmul.mubr.bf16.gmra.mxu0 %v264
        %v314 = vpop.f32.mrf.mxu0
        %v315 = vadd.f32 0.0, %v314
        %v316 = vpop.f32.mrf.mxu0
        %v317 = vpop.f32.mrf.mxu0
        %v318 = vadd.f32 0.0, %v317
        %v319 = vpop.f32.mrf.mxu0
        %320 = vmatprep.mubr.bf16.mxu0 0
        %321 = vmatmul.mubr.bf16.gmra.mxu0 %v267
        %v322 = vpop.f32.mrf.mxu0
        %v323 = vadd.f32 0.0, %v322
        %v324 = vpop.f32.mrf.mxu0
        %v325 = vpop.f32.mrf.mxu0
        %v326 = vadd.f32 0.0, %v325
        %v327 = vpop.f32.mrf.mxu0
        %328 = vmatprep.mubr.bf16.mxu0 0
        %329 = vmatmul.mubr.bf16.gmra.mxu0 %v270
        %v330 = vpop.f32.mrf.mxu0
        %v331 = vadd.f32 0.0, %v330
        %v332 = vpop.f32.mrf.mxu0
        %v333 = vpop.f32.mrf.mxu0
        %v334 = vadd.f32 0.0, %v333
        %v335 = vpop.f32.mrf.mxu0
        %336 = vdwg.mxu0
        %v337 = vadd.f32 %v307, %v310
        %v338 = vadd.f32 %v337, %v315
        %v339 = vadd.f32 %v338, %v318
        %v340 = vadd.f32 %v339, %v323
        %v341 = vadd.f32 %v340, %v326
        %v342 = vadd.f32 %v341, %v331
        %v343 = vadd.f32 %v342, %v334
        %v344 = vrot.slane %v343, 4
        %v345 = vadd.f32 %v343, %v344
        %v346 = vrot.slane %v345, 2
        %v347 = vadd.f32 %v345, %v346
        %v348 = vrot.slane %v347, 1
        %v349 = vadd.f32 %v347, %v348
        %v350 = vmul.f32 %v349, 0.015625
        %v351 = vmul.f32 %v307, %v307
        %v352 = vmul.f32 %v310, %v310
        %v353 = vmul.f32 %v315, %v315
        %v354 = vmul.f32 %v318, %v318
        %v355 = vmul.f32 %v323, %v323
        %v356 = vmul.f32 %v326, %v326
        %v357 = vmul.f32 %v331, %v331
        %v358 = vmul.f32 %v334, %v334
        %v359 = vadd.f32 %v351, %v352
        %v360 = vadd.f32 %v359, %v353
        %v361 = vadd.f32 %v360, %v354
        %v362 = vadd.f32 %v361, %v355
        %v363 = vadd.f32 %v362, %v356
        %v364 = vadd.f32 %v363, %v357
        %v365 = vadd.f32 %v364, %v358
        %v366 = vrot.slane %v365, 4
        %v367 = vadd.f32 %v365, %v366
        %v368 = vrot.slane %v367, 2
        %v369 = vadd.f32 %v367, %v368
        %v370 = vrot.slane %v369, 1
        %v371 = vadd.f32 %v369, %v370
        %v372 = vmul.f32 %v371, 0.015625
        %v373 = vmul.f32 %v350, %v350
        %v374 = vsub.f32 %v372, %v373
        %v375 = vmax.f32 %v374, 0.0
        %v376 = vadd.f32 %v375, 1e-05
        %v377 = vrsqrt.pop %v376
        %v378 = vsub.f32 %v307, %v350
        %v379 = vsub.f32 %v310, %v350
        %v380 = vsub.f32 %v315, %v350
        %v381 = vsub.f32 %v318, %v350
        %v382 = vsub.f32 %v323, %v350
        %v383 = vsub.f32 %v326, %v350
        %v384 = vsub.f32 %v331, %v350
        %v385 = vsub.f32 %v334, %v350
        %v386 = vmul.f32 %v378, %v377
        %v387 = vmul.f32 %v379, %v377
        %v388 = vmul.f32 %v380, %v377
        %v389 = vmul.f32 %v381, %v377
        %v390 = vmul.f32 %v382, %v377
        %v391 = vmul.f32 %v383, %v377
        %v392 = vmul.f32 %v384, %v377
        %v393 = vmul.f32 %v385, %v377
        %vm394 = vcmp.gt.f32.partialorder %v386, 0.0
        %vm395 = vcmp.gt.f32.partialorder %v387, 0.0
        %vm396 = vcmp.gt.f32.partialorder %v388, 0.0
        %vm397 = vcmp.gt.f32.partialorder %v389, 0.0
        %vm398 = vcmp.gt.f32.partialorder %v390, 0.0
        %vm399 = vcmp.gt.f32.partialorder %v391, 0.0
        %vm400 = vcmp.gt.f32.partialorder %v392, 0.0
        %vm401 = vcmp.gt.f32.partialorder %v393, 0.0
        %v402 = vmul.f32 %v386, 0.2
        %v403 = vmul.f32 %v387, 0.2
        %v404 = vmul.f32 %v388, 0.2
        %v405 = vmul.f32 %v389, 0.2
        %v406 = vmul.f32 %v390, 0.2
        %v407 = vmul.f32 %v391, 0.2
        %v408 = vmul.f32 %v392, 0.2
        %v409 = vmul.f32 %v393, 0.2
        %v410 = vsel %vm394, %v386, %v402
        %v411 = vsel %vm395, %v387, %v403
        %v412 = vsel %vm396, %v388, %v404
        %v413 = vsel %vm397, %v389, %v405
        %v414 = vsel %vm398, %v390, %v406
        %v415 = vsel %vm399, %v391, %v407
        %v416 = vsel %vm400, %v392, %v408
        %v417 = vsel %vm401, %v393, %v409
        %418 = vst [vmem:[%s197] sm:$0xff] %v410
        %419 = vst [vmem:[%s197 + $0x8] sm:$0xff] %v411
        %420 = vst [vmem:[%s197 + $0x10] sm:$0xff] %v412
        %421 = vst [vmem:[%s197 + $0x18] sm:$0xff] %v413
        %422 = vst [vmem:[%s197 + $0x20] sm:$0xff] %v414
        %423 = vst [vmem:[%s197 + $0x28] sm:$0xff] %v415
        %424 = vst [vmem:[%s197 + $0x30] sm:$0xff] %v416
        %425 = vst [vmem:[%s197 + $0x38] sm:$0xff] %v417
        %s426 = sand.u32 %s94, 1
        %s427 = scalar_lea.sflag [#allocation4], %s426
        %s428 = sand.u32 %s94, 1
        %s429 = smul.addr %s428, 64
        %s430 = scalar_lea.vmem [#allocation7], %s429
        // Predicated region
        $region37: #{tpu_custom_call.1} parent=27 // pred_check
          %p431 = pneg %p104
        $region38: #{tpu_custom_call.1} parent=27 // pred_check_branch
          %433 = sbr.rel (%p431) target = $region40
        $region39: #{tpu_custom_call.1} parent=27 // pred_region
          %s435 = ssub.s32 1024, 1024
          %436 = vsyncadd %s427, %s435
          %s437 = smul.addr %s25, 8
          %s438 = sadd.s32 %s24, %s437
          %s439 = smul.addr %s438, 128
          %s440 = scalar_lea.hbm %s2, %s439
          %s441 = sshll.u32 %s430, 4
          %s442 = int_to_ptr.vmem [resolvable:$true] %s441
          %447 = dma.vmem_to_hbm [thread:$0]  %s442, 1024, %s440, %s427, 128, 128, 8
        $region40: #{tpu_custom_call.1} parent=27 // pred_fallthru
          _
      $region28: #{tpu_custom_call.1} parent=5 // pred_fallthru
        _
      %p448 = scmp.le.s32.totalorder 2, %s15
      // Predicated region
      $region41: #{tpu_custom_call.1} parent=5 // pred_check
        %p449 = pneg %p448
      $region42: #{tpu_custom_call.1} parent=5 // pred_check_branch
        %451 = sbr.rel (%p449) target = $region44
      $region43: #{tpu_custom_call.1} parent=5 // pred_region
        %s452 = ssub.s32 %s15, 2
        // Predicated region
        $region45: #{tpu_custom_call.1} parent=43 // pred_check
          %p453 = pneg %p110
        $region46: #{tpu_custom_call.1} parent=43 // pred_check_branch
          %455 = sbr.rel (%p453) target = $region48
        $region47: #{tpu_custom_call.1} parent=43 // pred_region
          %s456 = sand.u32 %s95, 1
          %s457 = scalar_lea.sflag [#allocation4], %s456
          %s458 = sand.u32 %s95, 1
          %s459 = smul.addr %s458, 64
          %s460 = scalar_lea.vmem [#allocation7], %s459
          %461 = dma.done %s457, 1024
        $region48: #{tpu_custom_call.1} parent=43 // pred_fallthru
          _
      $region44: #{tpu_custom_call.1} parent=5 // pred_fallthru
        _
    $region6: #{tpu_custom_call.1} parent=1 // loop_footer
      %s19 = sadd.s32 1, %s15
    $region7: #{tpu_custom_call.1} parent=1 // loop_footer_branch
      %14 = sbr.rel target = $region3
    $region8: #{tpu_custom_call.1} parent=1 // loop_exit
      _
    %462 = vsyncpa [#allocation3], 1
    %s463 = scalar_lea.sflag [#allocation3], 1
    %464 = vsyncpa %s463, 1
    %465 = vsyncpa [#allocation6], 1
    %466 = vsyncpa [#allocation4], 1
    %s467 = scalar_lea.sflag [#allocation4], 1
    %468 = vsyncpa %s467, 1

</llo_original>
